<compile_context>
chip_gen: v5e
topology: v5e:2x2
jax: 0.10.0
libtpu: 0.0.40
codegen_flags: <defaults>
</compile_context>

<pallas_src>
import functools

import numpy as np
import jax
import jax.numpy as jnp
from jax.experimental import pallas as pl
from jax.experimental.pallas import tpu as pltpu

# -----------------------------------------------------------------------------
# db6 filters (pywt convention), hard-coded deterministically (12 taps).
# -----------------------------------------------------------------------------
_DB6_DEC_LO = np.array(
    [
        -0.00107730108499558,
        0.004777257511010651,
        0.0005538422009938016,
        -0.031582039318031156,
        0.02752286553001629,
        0.09750160558707936,
        -0.12976686756709563,
        -0.22626469396516913,
        0.3152503517092432,
        0.7511339080215775,
        0.4946238903983854,
        0.11154074335008017,
    ],
    dtype=np.float64,
)
_DB6_REC_LO = _DB6_DEC_LO[::-1].copy()                       # scaling filter
_DB6_REC_HI = ((-1.0) ** np.arange(12)) * _DB6_DEC_LO        # qmf
_DB6_DEC_HI = _DB6_REC_HI[::-1].copy()

_LF = 12           # filter length
_HALF = _LF // 2   # 6

# pytorch_wavelets prep: analysis filters are time-reversed dec filters
# (conv == correlation), synthesis filters are rec filters (conv_transpose).
_H0A = _DB6_DEC_LO[::-1].copy()   # == rec_lo
_H1A = _DB6_DEC_HI[::-1].copy()   # == rec_hi
_G0S = _DB6_REC_LO
_G1S = _DB6_REC_HI


# -----------------------------------------------------------------------------
# Static banded matrices (float64 numpy, built once per distinct L).
# -----------------------------------------------------------------------------
def _afb_matrix(n_in):
    """A (2M, n_in): A @ x == [lo ; hi] for one zero-mode db6 analysis level
    (pytorch_wavelets afb1d semantics: zero pad, stride-2 correlation)."""
    M = (n_in + _LF - 1) // 2
    p = 2 * (M - 1) - n_in + _LF          # total pad (extra odd zero at the end)
    left = p // 2
    A = np.zeros((2 * M, n_in), dtype=np.float64)
    for m in range(M):
        for k in range(_LF):
            n = 2 * m + k - left          # index into the *unpadded* signal
            if 0 <= n < n_in:
                A[m, n] = _H0A[k]
                A[M + m, n] = _H1A[k]
    return A, M


def _sfb_matrices(m_in):
    """Slo/Shi (n_out, m_in): y = Slo@lo + Shi@hi for one zero-mode db6
    synthesis level (stride-2 conv_transpose with padding = L-2)."""
    n_out = 2 * m_in - (_LF - 2)
    T = n_out // 2
    Slo = np.zeros((n_out, m_in), dtype=np.float64)
    Shi = np.zeros((n_out, m_in), dtype=np.float64)
    for t in range(T):
        for r in range(2):
            n = 2 * t + r
            for q in range(_HALF):
                c = t + _HALF - 1 - q
                Slo[n, c] = _G0S[2 * q + r]
                Shi[n, c] = _G1S[2 * q + r]
    return Slo, Shi, n_out


@functools.lru_cache(maxsize=None)
def _composed_operator(L):
    """Pre-compose the full J=3 DWT -> IDWT cascade into one (N1, L) matrix."""
    A1, M1 = _afb_matrix(L)               # (2M1, L)
    A2, M2 = _afb_matrix(M1)              # (2M2, M1)
    A3, M3 = _afb_matrix(M2)              # (2M3, M2)

    # analysis prefixes, all acting directly on x
    LO1, HI1 = A1[:M1], A1[M1:]                       # (M1, L)
    LO2, HI2 = A2[:M2] @ LO1, A2[M2:] @ LO1           # (M2, L)
    LO3, HI3 = A3[:M3] @ LO2, A3[M3:] @ LO2           # (M3, L)

    # synthesis, with the DWT1DInverse per-level crop (ll[..., :-1]) baked in
    S3lo, S3hi, N3 = _sfb_matrices(M3)
    Y3 = S3lo @ LO3 + S3hi @ HI3                      # (N3, L)
    assert 0 <= N3 - M2 <= 1
    S2lo, S2hi, N2 = _sfb_matrices(M2)
    Y2 = S2lo @ Y3[:M2] + S2hi @ HI2                  # (N2, L)
    assert 0 <= N2 - M1 <= 1
    S1lo, S1hi, N1 = _sfb_matrices(M1)
    W = S1lo @ Y2[:M1] + S1hi @ HI1                   # (N1, L)

    return W.astype(np.float32), N1


# -----------------------------------------------------------------------------
# Pallas kernel: one MXU matmul per (bt, L) row block.
# -----------------------------------------------------------------------------
def _periodic_kernel(x_ref, wt_ref, o_ref):
    # x_ref: (bt, L), wt_ref: (L, N1) resident weight, o_ref: (bt, N1)
    o_ref[...] = jnp.dot(x_ref[...], wt_ref[...],
                         preferred_element_type=jnp.float32)


_ROW_TARGET_BYTES = 4 << 20   # ~4 MiB of x+out per block (x2 for double buffer)


def _pick_row_block(B, L, N1):
    """Row-block size: multiple of 8 sublanes, few-MiB VMEM footprint, and
    >= 2 grid steps whenever B allows it (v7x megacore)."""
    bytes_per_row = 4 * (L + N1)
    bt = int(max(8, min(4096, _ROW_TARGET_BYTES // bytes_per_row)))
    bt -= bt % 8
    if B <= bt:
        if B >= 16:
            bt = (((B + 1) // 2) + 7) // 8 * 8   # split into ~2 blocks
        else:
            bt = ((B + 7) // 8) * 8              # single tiny block
    return bt


def periodic_forward(x):
    """Periodic.forward: yl, yh = DWT(x, db6, J=3); return IDWT(yl, yh).

    x: (N, C, L) -> (N, C, N1)  (N1 == L for even L; L+1 for odd L, matching
    pytorch_wavelets zero-mode conventions)."""
    N, C, L = x.shape
    B = N * C
    W_np, N1 = _composed_operator(L)
    wT = jnp.asarray(W_np.T)                         # (L, N1), resident weight

    xf = x.reshape(B, L).astype(jnp.float32)         # no transpose, no copy

    bt = _pick_row_block(B, L, N1)
    bp = ((B + bt - 1) // bt) * bt
    if bp != B:
        xf = jnp.pad(xf, ((0, bp - B), (0, 0)))
    grid = (bp // bt,)

    out = pl.pallas_call(
        _periodic_kernel,
        out_shape=jax.ShapeDtypeStruct((bp, N1), jnp.float32),
        grid=grid,
        in_specs=[pl.BlockSpec((bt, L), lambda i: (i, 0)),
                  pl.BlockSpec((L, N1), lambda i: (0, 0))],
        out_specs=pl.BlockSpec((bt, N1), lambda i: (i, 0)),
        compiler_params=pltpu.CompilerParams(
            dimension_semantics=("parallel",),
            vmem_limit_bytes=32 * 1024 * 1024),
    )(xf, wT)

    if bp != B:
        out = out[:B]
    return out.reshape(N, C, N1).astype(x.dtype)


# -----------------------------------------------------------------------------
if __name__ == "__main__":
    key = jax.random.PRNGKey(0)
    x = jax.random.normal(key, (2, 4, 64), dtype=jnp.float32)

    out = jax.jit(periodic_forward)(x)
    out = jax.block_until_ready(out)

    assert out.shape == x.shape, (out.shape, x.shape)
    # db6 zero-mode DWT -> IDWT is perfect reconstruction up to fp roundoff.
    max_err = float(jnp.max(jnp.abs(out - x)))
    assert max_err < 1e-3, f"reconstruction error too large: {max_err}"
    print("KERNEL_OK")
</pallas_src>

<mosaic_0001>
module attributes {stable_mosaic.version = 11 : i64} {
  func.func @_periodic_kernel(%arg0: i32, %arg1: memref<8x64xf32, #tpu.memory_space<vmem>>, %arg2: memref<64x64xf32, #tpu.memory_space<vmem>>, %arg3: memref<8x64xf32, #tpu.memory_space<vmem>>) attributes {dimension_semantics = [#tpu.dimension_semantics<parallel>], iteration_bounds = array<i64: 1>, scalar_prefetch = 0 : i64, scratch_operands = 0 : i64, tpu.core_type = #tpu.core_type<tc>, window_params = [{transform_indices = @transform_0, window_bounds = array<i64: 8, 64>}, {pipeline_mode = #tpu.pipeline_mode<synchronous>, transform_indices = @transform_1, window_bounds = array<i64: 64, 64>}, {transform_indices = @transform_2, window_bounds = array<i64: 8, 64>}]} {
    %c0 = arith.constant 0 : index
    %c0_0 = arith.constant 0 : index
    %0 = vector.load %arg1[%c0, %c0_0] : memref<8x64xf32, #tpu.memory_space<vmem>>, vector<8x64xf32>
    %c0_1 = arith.constant 0 : index
    %c0_2 = arith.constant 0 : index
    %1 = vector.load %arg2[%c0_1, %c0_2] : memref<64x64xf32, #tpu.memory_space<vmem>>, vector<64x64xf32>
    %cst = arith.constant dense<0.000000e+00> : vector<8x64xf32>
    %2 = tpu.matmul %0, %1, %cst {dimension_numbers = #tpu.dot_dimension_numbers<[1], [0], [0], [1], [0, 0, 1, 1], [], []>} : vector<8x64xf32>, vector<64x64xf32>, vector<8x64xf32> -> vector<8x64xf32>
    %c0_3 = arith.constant 0 : index
    %c0_4 = arith.constant 0 : index
    %3 = vector.load %arg3[%c0_3, %c0_4] : memref<8x64xf32, #tpu.memory_space<vmem>>, vector<8x64xf32>
    tpu.vector_store %arg3[%c0_3, %c0_4], %2 {strides = array<i32>} : memref<8x64xf32, #tpu.memory_space<vmem>>, vector<8x64xf32>,
    return
  }
  func.func @transform_0(%arg0: i32) -> (i32, i32) {
    %c0_i32 = arith.constant 0 : i32
    %c0_i32_0 = arith.constant 0 : i32
    return %arg0, %c0_i32 : i32, i32
  }
  func.func @transform_1(%arg0: i32) -> (i32, i32) {
    %c0_i32 = arith.constant 0 : i32
    %c0_i32_0 = arith.constant 0 : i32
    %c0_i32_1 = arith.constant 0 : i32
    return %c0_i32, %c0_i32_0 : i32, i32
  }
  func.func @transform_2(%arg0: i32) -> (i32, i32) {
    %c0_i32 = arith.constant 0 : i32
    %c0_i32_0 = arith.constant 0 : i32
    return %arg0, %c0_i32 : i32, i32
  }
}

</mosaic_0001>

<llo_original>
// kernel: periodic_forward.1
$region0: #{periodic_forward.1}
  #allocation0 [shape = 'u32[]', space=smem, size = 0x4, offset = 0x4, fixed_abs, tag = 'smem constant byte address 0x4 - core index']
  #allocation1 [shape = 'u32[72,128]{1,0:T(1,128)}', space=vmem, size = 0x9000, scoped, tag = 'internal scratch']
  %s0 = inlined_call_operand.hbm [shape: f32[8,64], index: 0, kind: input, shape index: {}]
  %s1 = inlined_call_operand.hbm [shape: f32[64,64], index: 1, kind: input, shape index: {}]
  %s2 = inlined_call_operand.hbm [shape: f32[8,64], index: 2, kind: output, shape index: {}]
  %s3 = sld [smem:[#allocation0]]
  $region26: #{periodic_forward.1} parent=0
    _
  %s5 = ssub.s32 1, %s3
  %s6 = scalar_select 0, %s5, %s3
  $region1: #{periodic_forward.1} parent=0
    #allocation2 [shape = 'u8[4096]{0}', space=vmem, size = 0x1000, scoped, tag = 'input window, operand 0, single buffered']
    #allocation3 [shape = 's32[1]{0}', space=sflag, size = 0x4, scoped, tag = 'scoped memory for periodic_forward.1']
    #allocation4 [shape = 's32[1]{0}', space=sflag, size = 0x4, scoped, tag = 'scoped memory for periodic_forward.1']
    #allocation5 [shape = 'u8[32768]{0}', space=vmem, size = 0x8000, scoped, tag = 'input window, operand 1, single buffered']
    #allocation6 [shape = 's32[1]{0}', space=sflag, size = 0x4, scoped, tag = 'scoped memory for periodic_forward.1']
    #allocation7 [shape = 'u8[4096]{0}', space=vmem, size = 0x1000, scoped, tag = 'output window, operand 0, single buffered']
    %7 = vsyncpa [#allocation3], 0
    %8 = vsyncpa [#allocation6], 0
    %9 = vsyncpa [#allocation4], 0
    // Predicated region
    $region2: #{periodic_forward.1} parent=1 // pred_check
      _
    $region3: #{periodic_forward.1} parent=1 // pred_check_branch
      %11 = sbr.rel (0) target = $region5
    $region4: #{periodic_forward.1} parent=1 // pred_region
      %13 = vsyncadd [#allocation3], 0
      %s15 = sshll.u32 %s0, 4
      %s16 = int_to_ptr.hbm [resolvable:$true] %s15
      %s17 = sshll.u32 [#allocation2], 4
      %s18 = int_to_ptr.vmem [resolvable:$true] %s17
      %20 = dma.hbm_to_vmem [thread:$0]  %s16, 128, %s18, [#allocation3]
    $region5: #{periodic_forward.1} parent=1 // pred_fallthru
      _
    // Predicated region
    $region6: #{periodic_forward.1} parent=1 // pred_check
      _
    $region7: #{periodic_forward.1} parent=1 // pred_check_branch
      %22 = sbr.rel (0) target = $region9
    $region8: #{periodic_forward.1} parent=1 // pred_region
      %24 = vsyncadd [#allocation6], 0
      %s25 = sshll.u32 %s1, 4
      %s26 = int_to_ptr.hbm [resolvable:$true] %s25
      %s27 = sshll.u32 [#allocation5], 4
      %s28 = int_to_ptr.vmem [resolvable:$true] %s27
      %33 = dma.hbm_to_vmem [thread:$0]  %s26, 1024, %s28, [#allocation6], 128, 128, 8
    $region9: #{periodic_forward.1} parent=1 // pred_fallthru
      _
    // Predicated region
    $region10: #{periodic_forward.1} parent=1 // pred_check
      _
    $region11: #{periodic_forward.1} parent=1 // pred_check_branch
      %35 = sbr.rel (0) target = $region13
    $region12: #{periodic_forward.1} parent=1 // pred_region
      %37 = dma.done [#allocation3], 128
    $region13: #{periodic_forward.1} parent=1 // pred_fallthru
      _
    // Predicated region
    $region14: #{periodic_forward.1} parent=1 // pred_check
      _
    $region15: #{periodic_forward.1} parent=1 // pred_check_branch
      %39 = sbr.rel (0) target = $region17
    $region16: #{periodic_forward.1} parent=1 // pred_region
      %41 = dma.done [#allocation6], 1024
    $region17: #{periodic_forward.1} parent=1 // pred_fallthru
      _
    %v42 = vld [vmem:[#allocation2] sm:$0xff]
    %v43 = vld [vmem:[#allocation5] sm:$0xff]
    %v44 = vld [vmem:[#allocation5 + $0x8] sm:$0xff]
    %v45 = vld [vmem:[#allocation5 + $0x10] sm:$0xff]
    %v46 = vld [vmem:[#allocation5 + $0x18] sm:$0xff]
    %v47 = vld [vmem:[#allocation5 + $0x20] sm:$0xff]
    %v48 = vld [vmem:[#allocation5 + $0x28] sm:$0xff]
    %v49 = vld [vmem:[#allocation5 + $0x30] sm:$0xff]
    %v50 = vld [vmem:[#allocation5 + $0x38] sm:$0xff]
    %vm51 = vcmask 523264
    %v53 = vsel %vm51, %v42, 0
    %55 = vmatpush.msra.mxu0 0.0
    %56 = vmatpush.msra.mxu0 0.0
    %57 = vmatpush.msra.mxu0 0.0
    %58 = vmatpush.msra.mxu0 0.0
    %59 = vmatpush.msra.mxu0 0.0
    %60 = vmatpush.msra.mxu0 0.0
    %61 = vmatpush.msra.mxu0 0.0
    %62 = vmatpush.msra.mxu0 0.0
    %63 = vmatpush.msra.mxu0 %v50
    %64 = vmatpush.msra.mxu0 %v49
    %65 = vmatpush.msra.mxu0 %v48
    %66 = vmatpush.msra.mxu0 %v47
    %67 = vmatpush.msra.mxu0 %v46
    %68 = vmatpush.msra.mxu0 %v45
    %69 = vmatpush.msra.mxu0 %v44
    %70 = vmatpush.msra.mxu0 %v43
    %71 = vmatmul.f32.gmra.mxu0 %v53
    %v72 = vpop.f32.mrf.mxu0
    %v73 = vadd.f32 0.0, %v72
    %74 = vdwg.mxu0
    %75 = vst.msk [vmem:[#allocation7] sm:$0xff] %vm51, %v73
    // Predicated region
    $region18: #{periodic_forward.1} parent=1 // pred_check
      _
    $region19: #{periodic_forward.1} parent=1 // pred_check_branch
      %77 = sbr.rel (0) target = $region21
    $region20: #{periodic_forward.1} parent=1 // pred_region
      %79 = vsyncadd [#allocation4], 0
      %s81 = sshll.u32 [#allocation7], 4
      %s82 = int_to_ptr.vmem [resolvable:$true] %s81
      %s83 = sshll.u32 %s2, 4
      %s84 = int_to_ptr.hbm [resolvable:$true] %s83
      %86 = dma.vmem_to_hbm [thread:$0]  %s82, 128, %s84, [#allocation4]
    $region21: #{periodic_forward.1} parent=1 // pred_fallthru
      _
    // Predicated region
    $region22: #{periodic_forward.1} parent=1 // pred_check
      _
    $region23: #{periodic_forward.1} parent=1 // pred_check_branch
      %88 = sbr.rel (0) target = $region25
    $region24: #{periodic_forward.1} parent=1 // pred_region
      %90 = dma.done [#allocation4], 128
    $region25: #{periodic_forward.1} parent=1 // pred_fallthru
      _
    %91 = vsyncpa [#allocation3], 1
    %92 = vsyncpa [#allocation6], 1
    %93 = vsyncpa [#allocation4], 1

</llo_original>
